<compile_context>
chip_gen: v5e
topology: v5e:2x2
jax: 0.10.0
libtpu: 0.0.40
codegen_flags: <defaults>
</compile_context>

<pallas_src>
import jax
import jax.numpy as jnp
from jax.experimental import pallas as pl
from jax.experimental.pallas import tpu as pltpu


def _round_up(x, m):
    return (x + m - 1) // m * m


# --------------------------------------------------------------------------- kernel
def _seven_eleven_kernel(x_ref,     # [Dm, TB]  bf16  pooled PLM features, batch in lanes
                         w_ref,     # [3G, Dm]  bf16  fused (cls ∘ gate) weights, transposed
                         b_ref,     # [3G, 1]   f32   fused gate bias (per gate-unit row)
                         wfc_ref,   # [8, G]    bf16  fc weight (row 0 real, rows 1..7 zero)
                         bfc_ref,   # [1, 1]    f32   fc bias (SMEM scalar)
                         out_ref):  # [1, TB]   f32   lane-dense result row
    G = wfc_ref.shape[1]            # 2H rounded up to 128 (gate-unit rows per direction pair)
    x = x_ref[...]                  # [Dm, TB]

    # Per-gate MXU matmul immediately consumed by its activation (short f32 live
    # ranges; sigmoid/tanh run on the EUP slot while the MXU pushes the next gate).
    def gate(k):
        return (jnp.dot(w_ref[k * G:(k + 1) * G, :], x,
                        preferred_element_type=jnp.float32)
                + b_ref[k * G:(k + 1) * G, :])

    i_g = jax.nn.sigmoid(gate(0))
    g_g = jnp.tanh(gate(1))
    o_g = jax.nn.sigmoid(gate(2))

    # Single-timestep LSTM cell with h0 = c0 = 0 (forget-gate term vanishes):
    #   c = i * g,  h = o * tanh(c).  Zero-padded gate rows give exactly 0.
    h = o_g * jnp.tanh(i_g * g_g)                      # [G, TB], rows = [h_fwd | h_bwd | 0]

    # fc over concat([h_fwd, h_bwd]): tiny [8, G] @ [G, TB] matmul, row 0 is the result.
    out8 = jnp.dot(wfc_ref[...], h.astype(wfc_ref.dtype),
                   preferred_element_type=jnp.float32)  # [8, TB]
    out_ref[...] = out8[0:1, :] + bfc_ref[0, 0]


# --------------------------------------------------------------------------- params
def make_params(key, vocab=128, d_model=32, hidden=64):
    """Semantic (f32) parameters, PyTorch-equivalent layout.

    LSTM weights are stored pre-transposed ([in, 4H]) with PyTorch gate order
    (i, f, g, o); biases are b_ih + b_hh combined (valid since they are only summed).
    """
    ks = jax.random.split(key, 10)
    n = lambda k, shape, s=0.1: (s * jax.random.normal(k, shape)).astype(jnp.float32)
    H = hidden
    return {
        # synthetic PLM
        "embed": n(ks[0], (vocab, d_model)),
        "w_cls": n(ks[1], (d_model, H)),
        "b_cls": n(ks[2], (1, H)),
        # BiLSTM
        "w_ih_f": n(ks[3], (H, 4 * H)),
        "b_f": n(ks[4], (1, 4 * H)),
        "w_ih_b": n(ks[5], (H, 4 * H)),
        "b_b": n(ks[6], (1, 4 * H)),
        # fc: [2H, 1] split into the two concat halves
        "w_fc_f": n(ks[7], (H, 1)),
        "w_fc_b": n(ks[8], (H, 1)),
        "b_fc": n(ks[9], (1, 1)),
    }


def prepare_params(p):
    """Offline algebraic fusion + TPU-friendly (transposed, batch-in-lanes) packing."""
    H = p["w_cls"].shape[1]
    G = _round_up(2 * H, 128)           # gate-unit rows per gate block ([fwd | bwd | 0-pad])

    def pick(w, k):                      # gate k columns, PyTorch order (i, f, g, o)
        return w[..., k * H:(k + 1) * H]

    def gate_block(k):                   # [fwd | bwd | 0-pad] for one gate
        bw = jnp.concatenate([pick(p["w_ih_f"], k), pick(p["w_ih_b"], k)], axis=-1)
        bb = jnp.concatenate([pick(p["b_f"], k), pick(p["b_b"], k)], axis=-1)
        return (jnp.pad(bw, ((0, 0), (0, G - 2 * H))),
                jnp.pad(bb, ((0, 0), (0, G - 2 * H))))

    blocks = [gate_block(k) for k in (0, 2, 3)]                       # i, g, o (f dropped)
    w_gates = jnp.concatenate([bw for bw, _ in blocks], axis=-1)      # [H, 3G]
    b_gates = jnp.concatenate([bb for _, bb in blocks], axis=-1)      # [1, 3G]

    # Fold the classifier head (no nonlinearity between head and LSTM input):
    #   gates(x) = (x @ w_cls + b_cls) @ w_gates + b_gates
    w_fused = p["w_cls"] @ w_gates                                    # [Dm, 3G]
    b_fused = p["b_cls"] @ w_gates + b_gates                          # [1, 3G]

    # fc weight rows match the [h_fwd | h_bwd | 0] gate-row layout; packed as an
    # [8, G] bf16 slab (row 0 real) so the fc is a single tiny MXU matmul.
    w_fc = jnp.concatenate([p["w_fc_f"], p["w_fc_b"]], axis=0)        # [2H, 1]
    w_fc = jnp.pad(w_fc, ((0, G - 2 * H), (0, 0)))                    # [G, 1]
    w_fc_t = jnp.pad(w_fc.T, ((0, 7), (0, 0)))                        # [8, G]

    return {
        "embed_t": p["embed"].T,                                      # [Dm, vocab]
        "w_gates_t": w_fused.T.astype(jnp.bfloat16),                  # [3G, Dm]
        "b_gates_t": b_fused.T.astype(jnp.float32),                   # [3G, 1]
        "w_fc_t": w_fc_t.astype(jnp.bfloat16),                        # [8, G]
        "b_fc": p["b_fc"].astype(jnp.float32),                        # [1, 1]  (SMEM scalar)
    }


# --------------------------------------------------------------------------- tiling
def _choose_tiling(B):
    """Batch lives in the lane dim: tiles are multiples of 128 lanes.

    - small B: one 128-lane tile (hardware minimum).
    - B > 128: at least 2 tiles so the 'parallel' grid axis shards across both
      TensorCores on v7x; tile capped at 1024 lanes so per-gate f32 intermediates
      stay at ~0.5 MB each (well under the scoped VMEM limit on v5e/v6e/v7x).
    """
    if B <= 128:
        return 128, 128
    half = _round_up(B, 256) // 2        # multiple of 128
    tb = min(1024, half)
    return tb, _round_up(B, tb)


# --------------------------------------------------------------------------- wrapper
def seven_eleven_forward(tokens, kp):
    """tokens: int32 [B, S] token ids; kp: prepare_params(...) output. Returns f32 [B, 1]."""
    B, S = tokens.shape
    Dm = kp["embed_t"].shape[0]
    G = kp["w_fc_t"].shape[1]

    # Synthetic PLM body (glue): transposed embedding gather + mean pool so the pooled
    # features come out with batch already in the lane dimension (no transpose op).
    # TODO(synk): the gather/pool could move into the kernel via PrefetchScalarGridSpec
    # (token ids in SMEM, embedding rows DMA'd) to cut XLA dispatches at tiny B.
    emb_t = jnp.take(kp["embed_t"], tokens.reshape(-1), axis=1)      # [Dm, B*S]
    pooled_t = jnp.mean(emb_t.reshape(Dm, B, S), axis=2)             # [Dm, B] f32

    TB, B_pad = _choose_tiling(B)
    x_t = jnp.pad(pooled_t, ((0, 0), (0, B_pad - B))).astype(jnp.bfloat16)

    num_tiles = B_pad // TB
    flops = 2 * B_pad * G * (3 * Dm + 8) + 5 * B_pad * G
    bytes_accessed = (x_t.size * 2 + B_pad * 4
                      + kp["w_gates_t"].size * 2 + kp["b_gates_t"].size * 4
                      + kp["w_fc_t"].size * 2 + 4)

    out = pl.pallas_call(
        _seven_eleven_kernel,
        out_shape=jax.ShapeDtypeStruct((1, B_pad), jnp.float32),
        grid=(num_tiles,),
        in_specs=[
            pl.BlockSpec((Dm, TB), lambda i: (0, i)),                 # batch-tiled (lanes)
            pl.BlockSpec(kp["w_gates_t"].shape, lambda i: (0, 0)),    # weights stay resident
            pl.BlockSpec(kp["b_gates_t"].shape, lambda i: (0, 0)),
            pl.BlockSpec(kp["w_fc_t"].shape, lambda i: (0, 0)),
            pl.BlockSpec(memory_space=pltpu.MemorySpace.SMEM),        # scalar fc bias
        ],
        out_specs=pl.BlockSpec((1, TB), lambda i: (0, i)),            # lane-dense output row
        compiler_params=pltpu.CompilerParams(
            dimension_semantics=("parallel",)),                       # shards across TCs on v7x
        cost_estimate=pl.CostEstimate(
            flops=flops,
            transcendentals=4 * B_pad * G,
            bytes_accessed=bytes_accessed),
    )(x_t, kp["w_gates_t"], kp["b_gates_t"], kp["w_fc_t"], kp["b_fc"])

    return out[0, :B].reshape(B, 1)


# --------------------------------------------------------------------------- reference
def _reference(tokens, p):
    """Pure-JAX f32 semantic reference (un-fused, un-packed)."""
    emb = jnp.take(p["embed"], tokens, axis=0)
    pooled = jnp.mean(emb, axis=1)
    H = p["w_cls"].shape[1]
    logits = pooled @ p["w_cls"] + p["b_cls"]

    def step(w, b):
        g = logits @ w + b
        i = jax.nn.sigmoid(g[:, :H])
        gg = jnp.tanh(g[:, 2 * H:3 * H])
        o = jax.nn.sigmoid(g[:, 3 * H:])
        return o * jnp.tanh(i * gg)          # c0 = 0 -> c = i*g

    hf = step(p["w_ih_f"], p["b_f"])
    hb = step(p["w_ih_b"], p["b_b"])
    return hf @ p["w_fc_f"] + hb @ p["w_fc_b"] + p["b_fc"]


if __name__ == "__main__":
    key = jax.random.PRNGKey(0)
    k_tok, k_par = jax.random.split(key)

    B, S, VOCAB, DM, H = 2, 8, 128, 32, 64      # hidden_size=64 as in the module default
    tokens = jax.random.randint(k_tok, (B, S), 0, VOCAB, dtype=jnp.int32)
    params = make_params(k_par, vocab=VOCAB, d_model=DM, hidden=H)
    kparams = prepare_params(params)

    out = seven_eleven_forward(tokens, kparams)
    out = jax.block_until_ready(out)

    ref = _reference(tokens, params)
    assert out.shape == (B, 1)
    # Tolerance accounts for bf16 weights/activations in the kernel vs f32 reference.
    assert jnp.allclose(out, ref, atol=2e-2, rtol=2e-2), (out, ref)
    print("KERNEL_OK")
</pallas_src>

<mosaic_0001>
module attributes {stable_mosaic.version = 11 : i64} {
  func.func @_seven_eleven_kernel(%arg0: i32, %arg1: memref<32x128xbf16, #tpu.memory_space<vmem>>, %arg2: memref<384x32xbf16, #tpu.memory_space<vmem>>, %arg3: memref<384x1xf32, #tpu.memory_space<vmem>>, %arg4: memref<8x128xbf16, #tpu.memory_space<vmem>>, %arg5: memref<1x1xf32, #tpu.memory_space<smem>>, %arg6: memref<1x128xf32, #tpu.memory_space<vmem>>) attributes {dimension_semantics = [#tpu.dimension_semantics<parallel>], iteration_bounds = array<i64: 1>, scalar_prefetch = 0 : i64, scratch_operands = 0 : i64, tpu.core_type = #tpu.core_type<tc>, window_params = [{transform_indices = @transform_0, window_bounds = array<i64: 32, 128>}, {pipeline_mode = #tpu.pipeline_mode<synchronous>, transform_indices = @transform_1, window_bounds = array<i64: 384, 32>}, {pipeline_mode = #tpu.pipeline_mode<synchronous>, transform_indices = @transform_2, window_bounds = array<i64: 384, 1>}, {pipeline_mode = #tpu.pipeline_mode<synchronous>, transform_indices = @transform_3, window_bounds = array<i64: 8, 128>}, {transform_indices = @transform_4, window_bounds = array<i64: 1, 1>}, {transform_indices = @transform_5, window_bounds = array<i64: 1, 128>}]} {
    %c0 = arith.constant 0 : index
    %c0_0 = arith.constant 0 : index
    %0 = vector.load %arg1[%c0, %c0_0] : memref<32x128xbf16, #tpu.memory_space<vmem>>, vector<32x128xbf16>
    %c0_1 = arith.constant 0 : index
    %c0_2 = arith.constant 0 : index
    %1 = vector.load %arg2[%c0_1, %c0_2] : memref<384x32xbf16, #tpu.memory_space<vmem>>, vector<128x32xbf16>
    %cst = arith.constant dense<0.000000e+00> : vector<128x128xf32>
    %2 = tpu.matmul %1, %0, %cst {dimension_numbers = #tpu.dot_dimension_numbers<[1], [0], [0], [1], [0, 0, 1, 1], [], []>} : vector<128x32xbf16>, vector<32x128xbf16>, vector<128x128xf32> -> vector<128x128xf32>
    %c0_3 = arith.constant 0 : index
    %c0_4 = arith.constant 0 : index
    %3 = vector.load %arg3[%c0_3, %c0_4] : memref<384x1xf32, #tpu.memory_space<vmem>>, vector<128x1xf32>
    %4 = vector.broadcast %3 : vector<128x1xf32> to vector<128x128xf32>
    %5 = arith.addf %2, %4 : vector<128x128xf32>
    %6 = arith.negf %5 : vector<128x128xf32>
    %7 = math.exp %6 : vector<128x128xf32>
    %cst_5 = arith.constant 1.000000e+00 : f32
    %8 = vector.broadcast %cst_5 : f32 to vector<128x128xf32>
    %9 = arith.addf %8, %7 : vector<128x128xf32>
    %10 = arith.divf %8, %9 : vector<128x128xf32>
    %c128 = arith.constant 128 : index
    %c0_6 = arith.constant 0 : index
    %11 = vector.load %arg2[%c128, %c0_6] : memref<384x32xbf16, #tpu.memory_space<vmem>>, vector<128x32xbf16>
    %cst_7 = arith.constant dense<0.000000e+00> : vector<128x128xf32>
    %12 = tpu.matmul %11, %0, %cst_7 {dimension_numbers = #tpu.dot_dimension_numbers<[1], [0], [0], [1], [0, 0, 1, 1], [], []>} : vector<128x32xbf16>, vector<32x128xbf16>, vector<128x128xf32> -> vector<128x128xf32>
    %c128_8 = arith.constant 128 : index
    %c0_9 = arith.constant 0 : index
    %13 = vector.load %arg3[%c128_8, %c0_9] : memref<384x1xf32, #tpu.memory_space<vmem>>, vector<128x1xf32>
    %14 = vector.broadcast %13 : vector<128x1xf32> to vector<128x128xf32>
    %15 = arith.addf %12, %14 : vector<128x128xf32>
    %16 = math.tanh %15 : vector<128x128xf32>
    %c256 = arith.constant 256 : index
    %c0_10 = arith.constant 0 : index
    %17 = vector.load %arg2[%c256, %c0_10] : memref<384x32xbf16, #tpu.memory_space<vmem>>, vector<128x32xbf16>
    %cst_11 = arith.constant dense<0.000000e+00> : vector<128x128xf32>
    %18 = tpu.matmul %17, %0, %cst_11 {dimension_numbers = #tpu.dot_dimension_numbers<[1], [0], [0], [1], [0, 0, 1, 1], [], []>} : vector<128x32xbf16>, vector<32x128xbf16>, vector<128x128xf32> -> vector<128x128xf32>
    %c256_12 = arith.constant 256 : index
    %c0_13 = arith.constant 0 : index
    %19 = vector.load %arg3[%c256_12, %c0_13] : memref<384x1xf32, #tpu.memory_space<vmem>>, vector<128x1xf32>
    %20 = vector.broadcast %19 : vector<128x1xf32> to vector<128x128xf32>
    %21 = arith.addf %18, %20 : vector<128x128xf32>
    %22 = arith.negf %21 : vector<128x128xf32>
    %23 = math.exp %22 : vector<128x128xf32>
    %cst_14 = arith.constant 1.000000e+00 : f32
    %24 = vector.broadcast %cst_14 : f32 to vector<128x128xf32>
    %25 = arith.addf %24, %23 : vector<128x128xf32>
    %26 = arith.divf %24, %25 : vector<128x128xf32>
    %27 = arith.mulf %10, %16 : vector<128x128xf32>
    %28 = math.tanh %27 : vector<128x128xf32>
    %29 = arith.mulf %26, %28 : vector<128x128xf32>
    %c0_15 = arith.constant 0 : index
    %c0_16 = arith.constant 0 : index
    %30 = vector.load %arg4[%c0_15, %c0_16] : memref<8x128xbf16, #tpu.memory_space<vmem>>, vector<8x128xbf16>
    %31 = arith.truncf %29 : vector<128x128xf32> to vector<128x128xbf16>
    %cst_17 = arith.constant dense<0.000000e+00> : vector<8x128xf32>
    %32 = tpu.matmul %30, %31, %cst_17 {dimension_numbers = #tpu.dot_dimension_numbers<[1], [0], [0], [1], [0, 0, 1, 1], [], []>} : vector<8x128xbf16>, vector<128x128xbf16>, vector<8x128xf32> -> vector<8x128xf32>
    %33 = vector.extract_strided_slice %32 {offsets = [0, 0], sizes = [1, 128], strides = [1, 1]} : vector<8x128xf32> to vector<1x128xf32>
    %c0_18 = arith.constant 0 : index
    %c0_19 = arith.constant 0 : index
    %34 = memref.load %arg5[%c0_18, %c0_19] : memref<1x1xf32, #tpu.memory_space<smem>>
    %35 = vector.broadcast %34 : f32 to vector<1x128xf32>
    %36 = arith.addf %33, %35 : vector<1x128xf32>
    %c0_20 = arith.constant 0 : index
    %c0_21 = arith.constant 0 : index
    %37 = vector.load %arg6[%c0_20, %c0_21] : memref<1x128xf32, #tpu.memory_space<vmem>>, vector<1x128xf32>
    tpu.vector_store %arg6[%c0_20, %c0_21], %36 {strides = array<i32>} : memref<1x128xf32, #tpu.memory_space<vmem>>, vector<1x128xf32>,
    return
  }
  func.func @transform_0(%arg0: i32) -> (i32, i32) {
    %c0_i32 = arith.constant 0 : i32
    %c0_i32_0 = arith.constant 0 : i32
    return %c0_i32, %arg0 : i32, i32
  }
  func.func @transform_1(%arg0: i32) -> (i32, i32) {
    %c0_i32 = arith.constant 0 : i32
    %c0_i32_0 = arith.constant 0 : i32
    %c0_i32_1 = arith.constant 0 : i32
    return %c0_i32, %c0_i32_0 : i32, i32
  }
  func.func @transform_2(%arg0: i32) -> (i32, i32) {
    %c0_i32 = arith.constant 0 : i32
    %c0_i32_0 = arith.constant 0 : i32
    %c0_i32_1 = arith.constant 0 : i32
    return %c0_i32, %c0_i32_0 : i32, i32
  }
  func.func @transform_3(%arg0: i32) -> (i32, i32) {
    %c0_i32 = arith.constant 0 : i32
    %c0_i32_0 = arith.constant 0 : i32
    %c0_i32_1 = arith.constant 0 : i32
    return %c0_i32, %c0_i32_0 : i32, i32
  }
  func.func @transform_4(%arg0: i32) -> (i32, i32) {
    %c0_i32 = arith.constant 0 : i32
    %c0_i32_0 = arith.constant 0 : i32
    %c0_i32_1 = arith.constant 0 : i32
    return %c0_i32, %c0_i32_0 : i32, i32
  }
  func.func @transform_5(%arg0: i32) -> (i32, i32) {
    %c0_i32 = arith.constant 0 : i32
    %c0_i32_0 = arith.constant 0 : i32
    return %c0_i32, %arg0 : i32, i32
  }
}

</mosaic_0001>

<llo_original>
// kernel: tpu_custom_call.1
$region0: #{tpu_custom_call.1}
  #allocation0 [shape = 'u32[]', space=smem, size = 0x4, offset = 0x4, fixed_abs, tag = 'smem constant byte address 0x4 - core index']
  #allocation1 [shape = 'u32[72,128]{1,0:T(1,128)}', space=vmem, size = 0x9000, scoped, tag = 'internal scratch']
  #allocation2 [shape = 'f32[1,1]{1,0:T(1,128)S(6)}', space=smem, size = 0x200, scoped, tag = 'scoped memory for tpu_custom_call.1']
  %s0 = inlined_call_operand.vmem [shape: bf16[32,128], index: 0, kind: input, shape index: {}]
  %s1 = inlined_call_operand.vmem [shape: bf16[384,32], index: 1, kind: input, shape index: {}]
  %s2 = inlined_call_operand.vmem [shape: f32[384,1], index: 2, kind: input, shape index: {}]
  %s3 = inlined_call_operand.vmem [shape: bf16[8,128], index: 3, kind: input, shape index: {}]
  %s4 = inlined_call_operand.<no memory space> [shape: f32[1,1], index: 4, kind: input, shape index: {}]
  %s5 = inlined_call_operand.hbm [shape: f32[1,128], index: 5, kind: output, shape index: {}]
  %s6 = sld [smem:[#allocation0]]
  $region30: #{tpu_custom_call.1} parent=0
    _
  %s8 = ssub.s32 1, %s6
  %s9 = scalar_select 0, %s8, %s6
  %10 = sst [smem:[#allocation2]] %s4
  $region1: #{tpu_custom_call.1} parent=0
    #allocation3 [shape = 'u8[512]{0}', space=vmem, size = 0x400, scoped, tag = 'output window, operand 0, single buffered']
    #allocation4 [shape = 's32[1]{0}', space=sflag, size = 0x4, scoped, tag = 'scoped memory for tpu_custom_call.1']
    %11 = vsyncpa [#allocation4], 0
    // Predicated region
    $region2: #{tpu_custom_call.1} parent=1 // pred_check
      _
    $region3: #{tpu_custom_call.1} parent=1 // pred_check_branch
      %13 = sbr.rel (0) target = $region5
    $region4: #{tpu_custom_call.1} parent=1 // pred_region
      _
    $region5: #{tpu_custom_call.1} parent=1 // pred_fallthru
      _
    // Predicated region
    $region6: #{tpu_custom_call.1} parent=1 // pred_check
      _
    $region7: #{tpu_custom_call.1} parent=1 // pred_check_branch
      %15 = sbr.rel (0) target = $region9
    $region8: #{tpu_custom_call.1} parent=1 // pred_region
      _
    $region9: #{tpu_custom_call.1} parent=1 // pred_fallthru
      _
    // Predicated region
    $region10: #{tpu_custom_call.1} parent=1 // pred_check
      _
    $region11: #{tpu_custom_call.1} parent=1 // pred_check_branch
      %17 = sbr.rel (0) target = $region13
    $region12: #{tpu_custom_call.1} parent=1 // pred_region
      _
    $region13: #{tpu_custom_call.1} parent=1 // pred_fallthru
      _
    // Predicated region
    $region14: #{tpu_custom_call.1} parent=1 // pred_check
      _
    $region15: #{tpu_custom_call.1} parent=1 // pred_check_branch
      %19 = sbr.rel (0) target = $region17
    $region16: #{tpu_custom_call.1} parent=1 // pred_region
      _
    $region17: #{tpu_custom_call.1} parent=1 // pred_fallthru
      _
    // Predicated region
    $region18: #{tpu_custom_call.1} parent=1 // pred_check
      _
    $region19: #{tpu_custom_call.1} parent=1 // pred_check_branch
      %21 = sbr.rel (0) target = $region21
    $region20: #{tpu_custom_call.1} parent=1 // pred_region
      _
    $region21: #{tpu_custom_call.1} parent=1 // pred_fallthru
      _
    %v23 = vld [vmem:[%s0] sm:$0xf]
    %v24 = vld [vmem:[%s0 + $0x4] sm:$0xf]
    %v25 = vld [vmem:[%s0 + $0x8] sm:$0xf]
    %v26 = vld [vmem:[%s0 + $0xc] sm:$0xf]
    %v27 = vld [vmem:[%s1] sm:$0xf]
    %v28 = vld [vmem:[%s1 + $0x4] sm:$0xf]
    %v29 = vld [vmem:[%s1 + $0x8] sm:$0xf]
    %v30 = vld [vmem:[%s1 + $0xc] sm:$0xf]
    %v31 = vld [vmem:[%s1 + $0x10] sm:$0xf]
    %v32 = vld [vmem:[%s1 + $0x14] sm:$0xf]
    %v33 = vld [vmem:[%s1 + $0x18] sm:$0xf]
    %v34 = vld [vmem:[%s1 + $0x1c] sm:$0xf]
    %v35 = vld [vmem:[%s1 + $0x20] sm:$0xf]
    %v36 = vld [vmem:[%s1 + $0x24] sm:$0xf]
    %v37 = vld [vmem:[%s1 + $0x28] sm:$0xf]
    %v38 = vld [vmem:[%s1 + $0x2c] sm:$0xf]
    %v39 = vld [vmem:[%s1 + $0x30] sm:$0xf]
    %v40 = vld [vmem:[%s1 + $0x34] sm:$0xf]
    %v41 = vld [vmem:[%s1 + $0x38] sm:$0xf]
    %v42 = vld [vmem:[%s1 + $0x3c] sm:$0xf]
    %v43 = vld [vmem:[%s2] sm:$0xff]
    %v44 = vld [vmem:[%s2 + $0x8] sm:$0xff]
    %v45 = vld [vmem:[%s2 + $0x10] sm:$0xff]
    %v46 = vld [vmem:[%s2 + $0x18] sm:$0xff]
    %v47 = vld [vmem:[%s2 + $0x20] sm:$0xff]
    %v48 = vld [vmem:[%s2 + $0x28] sm:$0xff]
    %v49 = vld [vmem:[%s2 + $0x30] sm:$0xff]
    %v50 = vld [vmem:[%s2 + $0x38] sm:$0xff]
    %v51 = vld [vmem:[%s2 + $0x40] sm:$0xff]
    %v52 = vld [vmem:[%s2 + $0x48] sm:$0xff]
    %v53 = vld [vmem:[%s2 + $0x50] sm:$0xff]
    %v54 = vld [vmem:[%s2 + $0x58] sm:$0xff]
    %v55 = vld [vmem:[%s2 + $0x60] sm:$0xff]
    %v56 = vld [vmem:[%s2 + $0x68] sm:$0xff]
    %v57 = vld [vmem:[%s2 + $0x70] sm:$0xff]
    %v58 = vld [vmem:[%s2 + $0x78] sm:$0xff]
    %60 = vset.pattern.permute.xlu0 0
    %61 = vperm.xlu0 %60, %v43
    %v62 = vpop.permute.xlu0 %61
    %65 = vset.pattern.permute.xlu0 0
    %66 = vperm.xlu0 %65, %v44
    %v67 = vpop.permute.xlu0 %66
    %70 = vset.pattern.permute.xlu0 0
    %71 = vperm.xlu0 %70, %v45
    %v72 = vpop.permute.xlu0 %71
    %75 = vset.pattern.permute.xlu0 0
    %76 = vperm.xlu0 %75, %v46
    %v77 = vpop.permute.xlu0 %76
    %80 = vset.pattern.permute.xlu0 0
    %81 = vperm.xlu0 %80, %v47
    %v82 = vpop.permute.xlu0 %81
    %85 = vset.pattern.permute.xlu0 0
    %86 = vperm.xlu0 %85, %v48
    %v87 = vpop.permute.xlu0 %86
    %90 = vset.pattern.permute.xlu0 0
    %91 = vperm.xlu0 %90, %v49
    %v92 = vpop.permute.xlu0 %91
    %95 = vset.pattern.permute.xlu0 0
    %96 = vperm.xlu0 %95, %v50
    %v97 = vpop.permute.xlu0 %96
    %100 = vset.pattern.permute.xlu0 0
    %101 = vperm.xlu0 %100, %v51
    %v102 = vpop.permute.xlu0 %101
    %105 = vset.pattern.permute.xlu0 0
    %106 = vperm.xlu0 %105, %v52
    %v107 = vpop.permute.xlu0 %106
    %110 = vset.pattern.permute.xlu0 0
    %111 = vperm.xlu0 %110, %v53
    %v112 = vpop.permute.xlu0 %111
    %115 = vset.pattern.permute.xlu0 0
    %116 = vperm.xlu0 %115, %v54
    %v117 = vpop.permute.xlu0 %116
    %120 = vset.pattern.permute.xlu0 0
    %121 = vperm.xlu0 %120, %v55
    %v122 = vpop.permute.xlu0 %121
    %125 = vset.pattern.permute.xlu0 0
    %126 = vperm.xlu0 %125, %v56
    %v127 = vpop.permute.xlu0 %126
    %130 = vset.pattern.permute.xlu0 0
    %131 = vperm.xlu0 %130, %v57
    %v132 = vpop.permute.xlu0 %131
    %135 = vset.pattern.permute.xlu0 0
    %136 = vperm.xlu0 %135, %v58
    %v137 = vpop.permute.xlu0 %136
    %v155 = vunpack.c.l.b16 %v27
    %v156 = vunpack.c.l.b16 %v28
    %v157 = vunpack.c.l.b16 %v29
    %v158 = vunpack.c.l.b16 %v30
    %v159 = vunpack.c.l.b16 %v31
    %v160 = vunpack.c.l.b16 %v32
    %v161 = vunpack.c.l.b16 %v33
    %v162 = vunpack.c.l.b16 %v34
    %v163 = vunpack.c.l.b16 %v35
    %v164 = vunpack.c.l.b16 %v36
    %v165 = vunpack.c.l.b16 %v37
    %v166 = vunpack.c.l.b16 %v38
    %v167 = vunpack.c.l.b16 %v39
    %v168 = vunpack.c.l.b16 %v40
    %v169 = vunpack.c.l.b16 %v41
    %v170 = vunpack.c.l.b16 %v42
    %v171 = vpack.c.b16 %v156, %v155
    %v172 = vpack.c.b16 %v158, %v157
    %v173 = vpack.c.b16 %v160, %v159
    %v174 = vpack.c.b16 %v162, %v161
    %v175 = vpack.c.b16 %v164, %v163
    %v176 = vpack.c.b16 %v166, %v165
    %v177 = vpack.c.b16 %v168, %v167
    %v178 = vpack.c.b16 %v170, %v169
    %v183 = vunpack.c.l.b16 %v23
    %v184 = vunpack.c.l.b16 %v24
    %v185 = vunpack.c.l.b16 %v25
    %v186 = vunpack.c.l.b16 %v26
    %v187 = vpack.c.b16 %v184, %v183
    %v188 = vpack.c.b16 %v186, %v185
    %vm191 = vcmask 261120
    %v193 = vsel %vm191, %v171, 0
    %v196 = vsel %vm191, %v172, 0
    %v199 = vsel %vm191, %v173, 0
    %v202 = vsel %vm191, %v174, 0
    %v205 = vsel %vm191, %v175, 0
    %v208 = vsel %vm191, %v176, 0
    %v211 = vsel %vm191, %v177, 0
    %v214 = vsel %vm191, %v178, 0
    %216 = vmatpush.bf16.msra.mxu0 0
    %217 = vmatpush.bf16.msra.mxu0 0
    %218 = vmatpush.bf16.msra.mxu0 0
    %219 = vmatpush.bf16.msra.mxu0 0
    %220 = vmatpush.bf16.msra.mxu0 0
    %221 = vmatpush.bf16.msra.mxu0 0
    %222 = vmatpush.bf16.msra.mxu0 %v188
    %223 = vmatpush.bf16.msra.mxu0 %v187
    %224 = vmatmul.bf16.gmra.mxu0 %v193
    %v225 = vpop.f32.mrf.mxu0
    %v226 = vadd.f32 %v62, %v225
    %v227 = vpop.f32.mrf.mxu0
    %v228 = vadd.f32 %v67, %v227
    %229 = vmatmul.bf16.gmra.mxu0 %v196
    %v230 = vpop.f32.mrf.mxu0
    %v231 = vadd.f32 %v72, %v230
    %v232 = vpop.f32.mrf.mxu0
    %v233 = vadd.f32 %v77, %v232
    %234 = vmatmul.bf16.gmra.mxu0 %v199
    %v235 = vpop.f32.mrf.mxu0
    %v236 = vadd.f32 %v82, %v235
    %v237 = vpop.f32.mrf.mxu0
    %v238 = vadd.f32 %v87, %v237
    %239 = vmatmul.bf16.gmra.mxu0 %v202
    %v240 = vpop.f32.mrf.mxu0
    %v241 = vadd.f32 %v92, %v240
    %v242 = vpop.f32.mrf.mxu0
    %v243 = vadd.f32 %v97, %v242
    %244 = vmatmul.bf16.gmra.mxu0 %v205
    %v245 = vpop.f32.mrf.mxu0
    %v246 = vadd.f32 %v102, %v245
    %v247 = vpop.f32.mrf.mxu0
    %v248 = vadd.f32 %v107, %v247
    %249 = vmatmul.bf16.gmra.mxu0 %v208
    %v250 = vpop.f32.mrf.mxu0
    %v251 = vadd.f32 %v112, %v250
    %v252 = vpop.f32.mrf.mxu0
    %v253 = vadd.f32 %v117, %v252
    %254 = vmatmul.bf16.gmra.mxu0 %v211
    %v255 = vpop.f32.mrf.mxu0
    %v256 = vadd.f32 %v122, %v255
    %v257 = vpop.f32.mrf.mxu0
    %v258 = vadd.f32 %v127, %v257
    %259 = vmatmul.bf16.gmra.mxu0 %v214
    %v260 = vpop.f32.mrf.mxu0
    %v261 = vadd.f32 %v132, %v260
    %v262 = vpop.f32.mrf.mxu0
    %v263 = vadd.f32 %v137, %v262
    %264 = vdwg.mxu0
    %v265 = vxor.u32 %v226, 2147483648
    %v266 = vxor.u32 %v228, 2147483648
    %v267 = vxor.u32 %v231, 2147483648
    %v268 = vxor.u32 %v233, 2147483648
    %v269 = vxor.u32 %v236, 2147483648
    %v270 = vxor.u32 %v238, 2147483648
    %v271 = vxor.u32 %v241, 2147483648
    %v272 = vxor.u32 %v243, 2147483648
    %v273 = vxor.u32 %v246, 2147483648
    %v274 = vxor.u32 %v248, 2147483648
    %v275 = vxor.u32 %v251, 2147483648
    %v276 = vxor.u32 %v253, 2147483648
    %v277 = vxor.u32 %v256, 2147483648
    %v278 = vxor.u32 %v258, 2147483648
    %v279 = vxor.u32 %v261, 2147483648
    %v280 = vxor.u32 %v263, 2147483648
    %v281 = vmul.f32 %v265, 1.442695
    %v282 = vpow.pop %v281
    %v283 = vmul.f32 %v266, 1.442695
    %v284 = vpow.pop %v283
    %v285 = vmul.f32 %v267, 1.442695
    %v286 = vpow.pop %v285
    %v287 = vmul.f32 %v268, 1.442695
    %v288 = vpow.pop %v287
    %v289 = vmul.f32 %v269, 1.442695
    %v290 = vpow.pop %v289
    %v291 = vmul.f32 %v270, 1.442695
    %v292 = vpow.pop %v291
    %v293 = vmul.f32 %v271, 1.442695
    %v294 = vpow.pop %v293
    %v295 = vmul.f32 %v272, 1.442695
    %v296 = vpow.pop %v295
    %v297 = vmul.f32 %v273, 1.442695
    %v298 = vpow.pop %v297
    %v299 = vmul.f32 %v274, 1.442695
    %v300 = vpow.pop %v299
    %v301 = vmul.f32 %v275, 1.442695
    %v302 = vpow.pop %v301
    %v303 = vmul.f32 %v276, 1.442695
    %v304 = vpow.pop %v303
    %v305 = vmul.f32 %v277, 1.442695
    %v306 = vpow.pop %v305
    %v307 = vmul.f32 %v278, 1.442695
    %v308 = vpow.pop %v307
    %v309 = vmul.f32 %v279, 1.442695
    %v310 = vpow.pop %v309
    %v311 = vmul.f32 %v280, 1.442695
    %v312 = vpow.pop %v311
    %v313 = vadd.f32 %v282, 1.0
    %v314 = vadd.f32 %v284, 1.0
    %v315 = vadd.f32 %v286, 1.0
    %v316 = vadd.f32 %v288, 1.0
    %v317 = vadd.f32 %v290, 1.0
    %v318 = vadd.f32 %v292, 1.0
    %v319 = vadd.f32 %v294, 1.0
    %v320 = vadd.f32 %v296, 1.0
    %v321 = vadd.f32 %v298, 1.0
    %v322 = vadd.f32 %v300, 1.0
    %v323 = vadd.f32 %v302, 1.0
    %v324 = vadd.f32 %v304, 1.0
    %v325 = vadd.f32 %v306, 1.0
    %v326 = vadd.f32 %v308, 1.0
    %v327 = vadd.f32 %v310, 1.0
    %v328 = vadd.f32 %v312, 1.0
    %v329 = vrcp.pop %v313
    %v330 = vmul.f32 %v313, %v329
    %v331 = vsub.f32 1.0, %v330
    %v332 = vmul.f32 %v329, %v331
    %v333 = vadd.f32 %v329, %v332
    %vm334 = vweird.f32 %v313
    %vm335 = vweird.f32 %v329
    %vm336 = vmor %vm334, %vm335
    %v337 = vsel %vm336, %v329, %v333
    %v338 = vand.u32 2147483647, %v313
    %vm339 = vcmp.eq.f32.partialorder %v338, 8.507059e+37
    %v340 = vand.u32 %v313, 2147483648
    %v341 = vor.u32 1.1754944e-38, %v340
    %v342 = vsel %vm339, %v341, %v337
    %v343 = vmul.f32 1.0, %v342
    %v344 = vrcp.pop %v314
    %v345 = vmul.f32 %v314, %v344
    %v346 = vsub.f32 1.0, %v345
    %v347 = vmul.f32 %v344, %v346
    %v348 = vadd.f32 %v344, %v347
    %vm349 = vweird.f32 %v314
    %vm350 = vweird.f32 %v344
    %vm351 = vmor %vm349, %vm350
    %v352 = vsel %vm351, %v344, %v348
    %v353 = vand.u32 2147483647, %v314
    %vm354 = vcmp.eq.f32.partialorder %v353, 8.507059e+37
    %v355 = vand.u32 %v314, 2147483648
    %v356 = vor.u32 1.1754944e-38, %v355
    %v357 = vsel %vm354, %v356, %v352
    %v358 = vmul.f32 1.0, %v357
    %v359 = vrcp.pop %v315
    %v360 = vmul.f32 %v315, %v359
    %v361 = vsub.f32 1.0, %v360
    %v362 = vmul.f32 %v359, %v361
    %v363 = vadd.f32 %v359, %v362
    %vm364 = vweird.f32 %v315
    %vm365 = vweird.f32 %v359
    %vm366 = vmor %vm364, %vm365
    %v367 = vsel %vm366, %v359, %v363
    %v368 = vand.u32 2147483647, %v315
    %vm369 = vcmp.eq.f32.partialorder %v368, 8.507059e+37
    %v370 = vand.u32 %v315, 2147483648
    %v371 = vor.u32 1.1754944e-38, %v370
    %v372 = vsel %vm369, %v371, %v367
    %v373 = vmul.f32 1.0, %v372
    %v374 = vrcp.pop %v316
    %v375 = vmul.f32 %v316, %v374
    %v376 = vsub.f32 1.0, %v375
    %v377 = vmul.f32 %v374, %v376
    %v378 = vadd.f32 %v374, %v377
    %vm379 = vweird.f32 %v316
    %vm380 = vweird.f32 %v374
    %vm381 = vmor %vm379, %vm380
    %v382 = vsel %vm381, %v374, %v378
    %v383 = vand.u32 2147483647, %v316
    %vm384 = vcmp.eq.f32.partialorder %v383, 8.507059e+37
    %v385 = vand.u32 %v316, 2147483648
    %v386 = vor.u32 1.1754944e-38, %v385
    %v387 = vsel %vm384, %v386, %v382
    %v388 = vmul.f32 1.0, %v387
    %v389 = vrcp.pop %v317
    %v390 = vmul.f32 %v317, %v389
    %v391 = vsub.f32 1.0, %v390
    %v392 = vmul.f32 %v389, %v391
    %v393 = vadd.f32 %v389, %v392
    %vm394 = vweird.f32 %v317
    %vm395 = vweird.f32 %v389
    %vm396 = vmor %vm394, %vm395
    %v397 = vsel %vm396, %v389, %v393
    %v398 = vand.u32 2147483647, %v317
    %vm399 = vcmp.eq.f32.partialorder %v398, 8.507059e+37
    %v400 = vand.u32 %v317, 2147483648
    %v401 = vor.u32 1.1754944e-38, %v400
    %v402 = vsel %vm399, %v401, %v397
    %v403 = vmul.f32 1.0, %v402
    %v404 = vrcp.pop %v318
    %v405 = vmul.f32 %v318, %v404
    %v406 = vsub.f32 1.0, %v405
    %v407 = vmul.f32 %v404, %v406
    %v408 = vadd.f32 %v404, %v407
    %vm409 = vweird.f32 %v318
    %vm410 = vweird.f32 %v404
    %vm411 = vmor %vm409, %vm410
    %v412 = vsel %vm411, %v404, %v408
    %v413 = vand.u32 2147483647, %v318
    %vm414 = vcmp.eq.f32.partialorder %v413, 8.507059e+37
    %v415 = vand.u32 %v318, 2147483648
    %v416 = vor.u32 1.1754944e-38, %v415
    %v417 = vsel %vm414, %v416, %v412
    %v418 = vmul.f32 1.0, %v417
    %v419 = vrcp.pop %v319
    %v420 = vmul.f32 %v319, %v419
    %v421 = vsub.f32 1.0, %v420
    %v422 = vmul.f32 %v419, %v421
    %v423 = vadd.f32 %v419, %v422
    %vm424 = vweird.f32 %v319
    %vm425 = vweird.f32 %v419
    %vm426 = vmor %vm424, %vm425
    %v427 = vsel %vm426, %v419, %v423
    %v428 = vand.u32 2147483647, %v319
    %vm429 = vcmp.eq.f32.partialorder %v428, 8.507059e+37
    %v430 = vand.u32 %v319, 2147483648
    %v431 = vor.u32 1.1754944e-38, %v430
    %v432 = vsel %vm429, %v431, %v427
    %v433 = vmul.f32 1.0, %v432
    %v434 = vrcp.pop %v320
    %v435 = vmul.f32 %v320, %v434
    %v436 = vsub.f32 1.0, %v435
    %v437 = vmul.f32 %v434, %v436
    %v438 = vadd.f32 %v434, %v437
    %vm439 = vweird.f32 %v320
    %vm440 = vweird.f32 %v434
    %vm441 = vmor %vm439, %vm440
    %v442 = vsel %vm441, %v434, %v438
    %v443 = vand.u32 2147483647, %v320
    %vm444 = vcmp.eq.f32.partialorder %v443, 8.507059e+37
    %v445 = vand.u32 %v320, 2147483648
    %v446 = vor.u32 1.1754944e-38, %v445
    %v447 = vsel %vm444, %v446, %v442
    %v448 = vmul.f32 1.0, %v447
    %v449 = vrcp.pop %v321
    %v450 = vmul.f32 %v321, %v449
    %v451 = vsub.f32 1.0, %v450
    %v452 = vmul.f32 %v449, %v451
    %v453 = vadd.f32 %v449, %v452
    %vm454 = vweird.f32 %v321
    %vm455 = vweird.f32 %v449
    %vm456 = vmor %vm454, %vm455
    %v457 = vsel %vm456, %v449, %v453
    %v458 = vand.u32 2147483647, %v321
    %vm459 = vcmp.eq.f32.partialorder %v458, 8.507059e+37
    %v460 = vand.u32 %v321, 2147483648
    %v461 = vor.u32 1.1754944e-38, %v460
    %v462 = vsel %vm459, %v461, %v457
    %v463 = vmul.f32 1.0, %v462
    %v464 = vrcp.pop %v322
    %v465 = vmul.f32 %v322, %v464
    %v466 = vsub.f32 1.0, %v465
    %v467 = vmul.f32 %v464, %v466
    %v468 = vadd.f32 %v464, %v467
    %vm469 = vweird.f32 %v322
    %vm470 = vweird.f32 %v464
    %vm471 = vmor %vm469, %vm470
    %v472 = vsel %vm471, %v464, %v468
    %v473 = vand.u32 2147483647, %v322
    %vm474 = vcmp.eq.f32.partialorder %v473, 8.507059e+37
    %v475 = vand.u32 %v322, 2147483648
    %v476 = vor.u32 1.1754944e-38, %v475
    %v477 = vsel %vm474, %v476, %v472
    %v478 = vmul.f32 1.0, %v477
    %v479 = vrcp.pop %v323
    %v480 = vmul.f32 %v323, %v479
    %v481 = vsub.f32 1.0, %v480
    %v482 = vmul.f32 %v479, %v481
    %v483 = vadd.f32 %v479, %v482
    %vm484 = vweird.f32 %v323
    %vm485 = vweird.f32 %v479
    %vm486 = vmor %vm484, %vm485
    %v487 = vsel %vm486, %v479, %v483
    %v488 = vand.u32 2147483647, %v323
    %vm489 = vcmp.eq.f32.partialorder %v488, 8.507059e+37
    %v490 = vand.u32 %v323, 2147483648
    %v491 = vor.u32 1.1754944e-38, %v490
    %v492 = vsel %vm489, %v491, %v487
    %v493 = vmul.f32 1.0, %v492
    %v494 = vrcp.pop %v324
    %v495 = vmul.f32 %v324, %v494
    %v496 = vsub.f32 1.0, %v495
    %v497 = vmul.f32 %v494, %v496
    %v498 = vadd.f32 %v494, %v497
    %vm499 = vweird.f32 %v324
    %vm500 = vweird.f32 %v494
    %vm501 = vmor %vm499, %vm500
    %v502 = vsel %vm501, %v494, %v498
    %v503 = vand.u32 2147483647, %v324
    %vm504 = vcmp.eq.f32.partialorder %v503, 8.507059e+37
    %v505 = vand.u32 %v324, 2147483648
    %v506 = vor.u32 1.1754944e-38, %v505
    %v507 = vsel %vm504, %v506, %v502
    %v508 = vmul.f32 1.0, %v507
    %v509 = vrcp.pop %v325
    %v510 = vmul.f32 %v325, %v509
    %v511 = vsub.f32 1.0, %v510
    %v512 = vmul.f32 %v509, %v511
    %v513 = vadd.f32 %v509, %v512
    %vm514 = vweird.f32 %v325
    %vm515 = vweird.f32 %v509
    %vm516 = vmor %vm514, %vm515
    %v517 = vsel %vm516, %v509, %v513
    %v518 = vand.u32 2147483647, %v325
    %vm519 = vcmp.eq.f32.partialorder %v518, 8.507059e+37
    %v520 = vand.u32 %v325, 2147483648
    %v521 = vor.u32 1.1754944e-38, %v520
    %v522 = vsel %vm519, %v521, %v517
    %v523 = vmul.f32 1.0, %v522
    %v524 = vrcp.pop %v326
    %v525 = vmul.f32 %v326, %v524
    %v526 = vsub.f32 1.0, %v525
    %v527 = vmul.f32 %v524, %v526
    %v528 = vadd.f32 %v524, %v527
    %vm529 = vweird.f32 %v326
    %vm530 = vweird.f32 %v524
    %vm531 = vmor %vm529, %vm530
    %v532 = vsel %vm531, %v524, %v528
    %v533 = vand.u32 2147483647, %v326
    %vm534 = vcmp.eq.f32.partialorder %v533, 8.507059e+37
    %v535 = vand.u32 %v326, 2147483648
    %v536 = vor.u32 1.1754944e-38, %v535
    %v537 = vsel %vm534, %v536, %v532
    %v538 = vmul.f32 1.0, %v537
    %v539 = vrcp.pop %v327
    %v540 = vmul.f32 %v327, %v539
    %v541 = vsub.f32 1.0, %v540
    %v542 = vmul.f32 %v539, %v541
    %v543 = vadd.f32 %v539, %v542
    %vm544 = vweird.f32 %v327
    %vm545 = vweird.f32 %v539
    %vm546 = vmor %vm544, %vm545
    %v547 = vsel %vm546, %v539, %v543
    %v548 = vand.u32 2147483647, %v327
    %vm549 = vcmp.eq.f32.partialorder %v548, 8.507059e+37
    %v550 = vand.u32 %v327, 2147483648
    %v551 = vor.u32 1.1754944e-38, %v550
    %v552 = vsel %vm549, %v551, %v547
    %v553 = vmul.f32 1.0, %v552
    %v554 = vrcp.pop %v328
    %v555 = vmul.f32 %v328, %v554
    %v556 = vsub.f32 1.0, %v555
    %v557 = vmul.f32 %v554, %v556
    %v558 = vadd.f32 %v554, %v557
    %vm559 = vweird.f32 %v328
    %vm560 = vweird.f32 %v554
    %vm561 = vmor %vm559, %vm560
    %v562 = vsel %vm561, %v554, %v558
    %v563 = vand.u32 2147483647, %v328
    %vm564 = vcmp.eq.f32.partialorder %v563, 8.507059e+37
    %v565 = vand.u32 %v328, 2147483648
    %v566 = vor.u32 1.1754944e-38, %v565
    %v567 = vsel %vm564, %v566, %v562
    %v568 = vmul.f32 1.0, %v567
    %v569 = vld [vmem:[%s1 + $0x40] sm:$0xf]
    %v570 = vld [vmem:[%s1 + $0x44] sm:$0xf]
    %v571 = vld [vmem:[%s1 + $0x48] sm:$0xf]
    %v572 = vld [vmem:[%s1 + $0x4c] sm:$0xf]
    %v573 = vld [vmem:[%s1 + $0x50] sm:$0xf]
    %v574 = vld [vmem:[%s1 + $0x54] sm:$0xf]
    %v575 = vld [vmem:[%s1 + $0x58] sm:$0xf]
    %v576 = vld [vmem:[%s1 + $0x5c] sm:$0xf]
    %v577 = vld [vmem:[%s1 + $0x60] sm:$0xf]
    %v578 = vld [vmem:[%s1 + $0x64] sm:$0xf]
    %v579 = vld [vmem:[%s1 + $0x68] sm:$0xf]
    %v580 = vld [vmem:[%s1 + $0x6c] sm:$0xf]
    %v581 = vld [vmem:[%s1 + $0x70] sm:$0xf]
    %v582 = vld [vmem:[%s1 + $0x74] sm:$0xf]
    %v583 = vld [vmem:[%s1 + $0x78] sm:$0xf]
    %v584 = vld [vmem:[%s1 + $0x7c] sm:$0xf]
    %v585 = vld [vmem:[%s2 + $0x80] sm:$0xff]
    %v586 = vld [vmem:[%s2 + $0x88] sm:$0xff]
    %v587 = vld [vmem:[%s2 + $0x90] sm:$0xff]
    %v588 = vld [vmem:[%s2 + $0x98] sm:$0xff]
    %v589 = vld [vmem:[%s2 + $0xa0] sm:$0xff]
    %v590 = vld [vmem:[%s2 + $0xa8] sm:$0xff]
    %v591 = vld [vmem:[%s2 + $0xb0] sm:$0xff]
    %v592 = vld [vmem:[%s2 + $0xb8] sm:$0xff]
    %v593 = vld [vmem:[%s2 + $0xc0] sm:$0xff]
    %v594 = vld [vmem:[%s2 + $0xc8] sm:$0xff]
    %v595 = vld [vmem:[%s2 + $0xd0] sm:$0xff]
    %v596 = vld [vmem:[%s2 + $0xd8] sm:$0xff]
    %v597 = vld [vmem:[%s2 + $0xe0] sm:$0xff]
    %v598 = vld [vmem:[%s2 + $0xe8] sm:$0xff]
    %v599 = vld [vmem:[%s2 + $0xf0] sm:$0xff]
    %v600 = vld [vmem:[%s2 + $0xf8] sm:$0xff]
    %602 = vset.pattern.permute.xlu0 0
    %603 = vperm.xlu0 %602, %v585
    %v604 = vpop.permute.xlu0 %603
    %607 = vset.pattern.permute.xlu0 0
    %608 = vperm.xlu0 %607, %v586
    %v609 = vpop.permute.xlu0 %608
    %612 = vset.pattern.permute.xlu0 0
    %613 = vperm.xlu0 %612, %v587
    %v614 = vpop.permute.xlu0 %613
    %617 = vset.pattern.permute.xlu0 0
    %618 = vperm.xlu0 %617, %v588
    %v619 = vpop.permute.xlu0 %618
    %622 = vset.pattern.permute.xlu0 0
    %623 = vperm.xlu0 %622, %v589
    %v624 = vpop.permute.xlu0 %623
    %627 = vset.pattern.permute.xlu0 0
    %628 = vperm.xlu0 %627, %v590
    %v629 = vpop.permute.xlu0 %628
    %632 = vset.pattern.permute.xlu0 0
    %633 = vperm.xlu0 %632, %v591
    %v634 = vpop.permute.xlu0 %633
    %637 = vset.pattern.permute.xlu0 0
    %638 = vperm.xlu0 %637, %v592
    %v639 = vpop.permute.xlu0 %638
    %642 = vset.pattern.permute.xlu0 0
    %643 = vperm.xlu0 %642, %v593
    %v644 = vpop.permute.xlu0 %643
    %647 = vset.pattern.permute.xlu0 0
    %648 = vperm.xlu0 %647, %v594
    %v649 = vpop.permute.xlu0 %648
    %652 = vset.pattern.permute.xlu0 0
    %653 = vperm.xlu0 %652, %v595
    %v654 = vpop.permute.xlu0 %653
    %657 = vset.pattern.permute.xlu0 0
    %658 = vperm.xlu0 %657, %v596
    %v659 = vpop.permute.xlu0 %658
    %662 = vset.pattern.permute.xlu0 0
    %663 = vperm.xlu0 %662, %v597
    %v664 = vpop.permute.xlu0 %663
    %667 = vset.pattern.permute.xlu0 0
    %668 = vperm.xlu0 %667, %v598
    %v669 = vpop.permute.xlu0 %668
    %672 = vset.pattern.permute.xlu0 0
    %673 = vperm.xlu0 %672, %v599
    %v674 = vpop.permute.xlu0 %673
    %677 = vset.pattern.permute.xlu0 0
    %678 = vperm.xlu0 %677, %v600
    %v679 = vpop.permute.xlu0 %678
    %v697 = vunpack.c.l.b16 %v569
    %v698 = vunpack.c.l.b16 %v570
    %v699 = vunpack.c.l.b16 %v571
    %v700 = vunpack.c.l.b16 %v572
    %v701 = vunpack.c.l.b16 %v573
    %v702 = vunpack.c.l.b16 %v574
    %v703 = vunpack.c.l.b16 %v575
    %v704 = vunpack.c.l.b16 %v576
    %v705 = vunpack.c.l.b16 %v577
    %v706 = vunpack.c.l.b16 %v578
    %v707 = vunpack.c.l.b16 %v579
    %v708 = vunpack.c.l.b16 %v580
    %v709 = vunpack.c.l.b16 %v581
    %v710 = vunpack.c.l.b16 %v582
    %v711 = vunpack.c.l.b16 %v583
    %v712 = vunpack.c.l.b16 %v584
    %v713 = vpack.c.b16 %v698, %v697
    %v714 = vpack.c.b16 %v700, %v699
    %v715 = vpack.c.b16 %v702, %v701
    %v716 = vpack.c.b16 %v704, %v703
    %v717 = vpack.c.b16 %v706, %v705
    %v718 = vpack.c.b16 %v708, %v707
    %v719 = vpack.c.b16 %v710, %v709
    %v720 = vpack.c.b16 %v712, %v711
    %v722 = vsel %vm191, %v713, 0
    %v725 = vsel %vm191, %v714, 0
    %v728 = vsel %vm191, %v715, 0
    %v731 = vsel %vm191, %v716, 0
    %v734 = vsel %vm191, %v717, 0
    %v737 = vsel %vm191, %v718, 0
    %v740 = vsel %vm191, %v719, 0
    %v743 = vsel %vm191, %v720, 0
    %745 = vmatpush.bf16.msra.mxu0 0
    %746 = vmatpush.bf16.msra.mxu0 0
    %747 = vmatpush.bf16.msra.mxu0 0
    %748 = vmatpush.bf16.msra.mxu0 0
    %749 = vmatpush.bf16.msra.mxu0 0
    %750 = vmatpush.bf16.msra.mxu0 0
    %751 = vmatpush.bf16.msra.mxu0 %v188
    %752 = vmatpush.bf16.msra.mxu0 %v187
    %753 = vmatmul.bf16.gmra.mxu0 %v722
    %v754 = vpop.f32.mrf.mxu0
    %v755 = vadd.f32 %v604, %v754
    %v756 = vpop.f32.mrf.mxu0
    %v757 = vadd.f32 %v609, %v756
    %758 = vmatmul.bf16.gmra.mxu0 %v725
    %v759 = vpop.f32.mrf.mxu0
    %v760 = vadd.f32 %v614, %v759
    %v761 = vpop.f32.mrf.mxu0
    %v762 = vadd.f32 %v619, %v761
    %763 = vmatmul.bf16.gmra.mxu0 %v728
    %v764 = vpop.f32.mrf.mxu0
    %v765 = vadd.f32 %v624, %v764
    %v766 = vpop.f32.mrf.mxu0
    %v767 = vadd.f32 %v629, %v766
    %768 = vmatmul.bf16.gmra.mxu0 %v731
    %v769 = vpop.f32.mrf.mxu0
    %v770 = vadd.f32 %v634, %v769
    %v771 = vpop.f32.mrf.mxu0
    %v772 = vadd.f32 %v639, %v771
    %773 = vmatmul.bf16.gmra.mxu0 %v734
    %v774 = vpop.f32.mrf.mxu0
    %v775 = vadd.f32 %v644, %v774
    %v776 = vpop.f32.mrf.mxu0
    %v777 = vadd.f32 %v649, %v776
    %778 = vmatmul.bf16.gmra.mxu0 %v737
    %v779 = vpop.f32.mrf.mxu0
    %v780 = vadd.f32 %v654, %v779
    %v781 = vpop.f32.mrf.mxu0
    %v782 = vadd.f32 %v659, %v781
    %783 = vmatmul.bf16.gmra.mxu0 %v740
    %v784 = vpop.f32.mrf.mxu0
    %v785 = vadd.f32 %v664, %v784
    %v786 = vpop.f32.mrf.mxu0
    %v787 = vadd.f32 %v669, %v786
    %788 = vmatmul.bf16.gmra.mxu0 %v743
    %v789 = vpop.f32.mrf.mxu0
    %v790 = vadd.f32 %v674, %v789
    %v791 = vpop.f32.mrf.mxu0
    %v792 = vadd.f32 %v679, %v791
    %793 = vdwg.mxu0
    %v794 = vtanh.pop %v755
    %v795 = vtanh.pop %v757
    %v796 = vtanh.pop %v760
    %v797 = vtanh.pop %v762
    %v798 = vtanh.pop %v765
    %v799 = vtanh.pop %v767
    %v800 = vtanh.pop %v770
    %v801 = vtanh.pop %v772
    %v802 = vtanh.pop %v775
    %v803 = vtanh.pop %v777
    %v804 = vtanh.pop %v780
    %v805 = vtanh.pop %v782
    %v806 = vtanh.pop %v785
    %v807 = vtanh.pop %v787
    %v808 = vtanh.pop %v790
    %v809 = vtanh.pop %v792
    %v810 = vld [vmem:[%s1 + $0x80] sm:$0xf]
    %v811 = vld [vmem:[%s1 + $0x84] sm:$0xf]
    %v812 = vld [vmem:[%s1 + $0x88] sm:$0xf]
    %v813 = vld [vmem:[%s1 + $0x8c] sm:$0xf]
    %v814 = vld [vmem:[%s1 + $0x90] sm:$0xf]
    %v815 = vld [vmem:[%s1 + $0x94] sm:$0xf]
    %v816 = vld [vmem:[%s1 + $0x98] sm:$0xf]
    %v817 = vld [vmem:[%s1 + $0x9c] sm:$0xf]
    %v818 = vld [vmem:[%s1 + $0xa0] sm:$0xf]
    %v819 = vld [vmem:[%s1 + $0xa4] sm:$0xf]
    %v820 = vld [vmem:[%s1 + $0xa8] sm:$0xf]
    %v821 = vld [vmem:[%s1 + $0xac] sm:$0xf]
    %v822 = vld [vmem:[%s1 + $0xb0] sm:$0xf]
    %v823 = vld [vmem:[%s1 + $0xb4] sm:$0xf]
    %v824 = vld [vmem:[%s1 + $0xb8] sm:$0xf]
    %v825 = vld [vmem:[%s1 + $0xbc] sm:$0xf]
    %v826 = vld [vmem:[%s2 + $0x100] sm:$0xff]
    %v827 = vld [vmem:[%s2 + $0x108] sm:$0xff]
    %v828 = vld [vmem:[%s2 + $0x110] sm:$0xff]
    %v829 = vld [vmem:[%s2 + $0x118] sm:$0xff]
    %v830 = vld [vmem:[%s2 + $0x120] sm:$0xff]
    %v831 = vld [vmem:[%s2 + $0x128] sm:$0xff]
    %v832 = vld [vmem:[%s2 + $0x130] sm:$0xff]
    %v833 = vld [vmem:[%s2 + $0x138] sm:$0xff]
    %v834 = vld [vmem:[%s2 + $0x140] sm:$0xff]
    %v835 = vld [vmem:[%s2 + $0x148] sm:$0xff]
    %v836 = vld [vmem:[%s2 + $0x150] sm:$0xff]
    %v837 = vld [vmem:[%s2 + $0x158] sm:$0xff]
    %v838 = vld [vmem:[%s2 + $0x160] sm:$0xff]
    %v839 = vld [vmem:[%s2 + $0x168] sm:$0xff]
    %v840 = vld [vmem:[%s2 + $0x170] sm:$0xff]
    %v841 = vld [vmem:[%s2 + $0x178] sm:$0xff]
    %843 = vset.pattern.permute.xlu0 0
    %844 = vperm.xlu0 %843, %v826
    %v845 = vpop.permute.xlu0 %844
    %848 = vset.pattern.permute.xlu0 0
    %849 = vperm.xlu0 %848, %v827
    %v850 = vpop.permute.xlu0 %849
    %853 = vset.pattern.permute.xlu0 0
    %854 = vperm.xlu0 %853, %v828
    %v855 = vpop.permute.xlu0 %854
    %858 = vset.pattern.permute.xlu0 0
    %859 = vperm.xlu0 %858, %v829
    %v860 = vpop.permute.xlu0 %859
    %863 = vset.pattern.permute.xlu0 0
    %864 = vperm.xlu0 %863, %v830
    %v865 = vpop.permute.xlu0 %864
    %868 = vset.pattern.permute.xlu0 0
    %869 = vperm.xlu0 %868, %v831
    %v870 = vpop.permute.xlu0 %869
    %873 = vset.pattern.permute.xlu0 0
    %874 = vperm.xlu0 %873, %v832
    %v875 = vpop.permute.xlu0 %874
    %878 = vset.pattern.permute.xlu0 0
    %879 = vperm.xlu0 %878, %v833
    %v880 = vpop.permute.xlu0 %879
    %883 = vset.pattern.permute.xlu0 0
    %884 = vperm.xlu0 %883, %v834
    %v885 = vpop.permute.xlu0 %884
    %888 = vset.pattern.permute.xlu0 0
    %889 = vperm.xlu0 %888, %v835
    %v890 = vpop.permute.xlu0 %889
    %893 = vset.pattern.permute.xlu0 0
    %894 = vperm.xlu0 %893, %v836
    %v895 = vpop.permute.xlu0 %894
    %898 = vset.pattern.permute.xlu0 0
    %899 = vperm.xlu0 %898, %v837
    %v900 = vpop.permute.xlu0 %899
    %903 = vset.pattern.permute.xlu0 0
    %904 = vperm.xlu0 %903, %v838
    %v905 = vpop.permute.xlu0 %904
    %908 = vset.pattern.permute.xlu0 0
    %909 = vperm.xlu0 %908, %v839
    %v910 = vpop.permute.xlu0 %909
    %913 = vset.pattern.permute.xlu0 0
    %914 = vperm.xlu0 %913, %v840
    %v915 = vpop.permute.xlu0 %914
    %918 = vset.pattern.permute.xlu0 0
    %919 = vperm.xlu0 %918, %v841
    %v920 = vpop.permute.xlu0 %919
    %v938 = vunpack.c.l.b16 %v810
    %v939 = vunpack.c.l.b16 %v811
    %v940 = vunpack.c.l.b16 %v812
    %v941 = vunpack.c.l.b16 %v813
    %v942 = vunpack.c.l.b16 %v814
    %v943 = vunpack.c.l.b16 %v815
    %v944 = vunpack.c.l.b16 %v816
    %v945 = vunpack.c.l.b16 %v817
    %v946 = vunpack.c.l.b16 %v818
    %v947 = vunpack.c.l.b16 %v819
    %v948 = vunpack.c.l.b16 %v820
    %v949 = vunpack.c.l.b16 %v821
    %v950 = vunpack.c.l.b16 %v822
    %v951 = vunpack.c.l.b16 %v823
    %v952 = vunpack.c.l.b16 %v824
    %v953 = vunpack.c.l.b16 %v825
    %v954 = vpack.c.b16 %v939, %v938
    %v955 = vpack.c.b16 %v941, %v940
    %v956 = vpack.c.b16 %v943, %v942
    %v957 = vpack.c.b16 %v945, %v944
    %v958 = vpack.c.b16 %v947, %v946
    %v959 = vpack.c.b16 %v949, %v948
    %v960 = vpack.c.b16 %v951, %v950
    %v961 = vpack.c.b16 %v953, %v952
    %v963 = vsel %vm191, %v954, 0
    %v966 = vsel %vm191, %v955, 0
    %v969 = vsel %vm191, %v956, 0
    %v972 = vsel %vm191, %v957, 0
    %v975 = vsel %vm191, %v958, 0
    %v978 = vsel %vm191, %v959, 0
    %v981 = vsel %vm191, %v960, 0
    %v984 = vsel %vm191, %v961, 0
    %986 = vmatpush.bf16.msra.mxu0 0
    %987 = vmatpush.bf16.msra.mxu0 0
    %988 = vmatpush.bf16.msra.mxu0 0
    %989 = vmatpush.bf16.msra.mxu0 0
    %990 = vmatpush.bf16.msra.mxu0 0
    %991 = vmatpush.bf16.msra.mxu0 0
    %992 = vmatpush.bf16.msra.mxu0 %v188
    %993 = vmatpush.bf16.msra.mxu0 %v187
    %994 = vmatmul.bf16.gmra.mxu0 %v963
    %v995 = vpop.f32.mrf.mxu0
    %v996 = vadd.f32 %v845, %v995
    %v997 = vpop.f32.mrf.mxu0
    %v998 = vadd.f32 %v850, %v997
    %999 = vmatmul.bf16.gmra.mxu0 %v966
    %v1000 = vpop.f32.mrf.mxu0
    %v1001 = vadd.f32 %v855, %v1000
    %v1002 = vpop.f32.mrf.mxu0
    %v1003 = vadd.f32 %v860, %v1002
    %1004 = vmatmul.bf16.gmra.mxu0 %v969
    %v1005 = vpop.f32.mrf.mxu0
    %v1006 = vadd.f32 %v865, %v1005
    %v1007 = vpop.f32.mrf.mxu0
    %v1008 = vadd.f32 %v870, %v1007
    %1009 = vmatmul.bf16.gmra.mxu0 %v972
    %v1010 = vpop.f32.mrf.mxu0
    %v1011 = vadd.f32 %v875, %v1010
    %v1012 = vpop.f32.mrf.mxu0
    %v1013 = vadd.f32 %v880, %v1012
    %1014 = vmatmul.bf16.gmra.mxu0 %v975
    %v1015 = vpop.f32.mrf.mxu0
    %v1016 = vadd.f32 %v885, %v1015
    %v1017 = vpop.f32.mrf.mxu0
    %v1018 = vadd.f32 %v890, %v1017
    %1019 = vmatmul.bf16.gmra.mxu0 %v978
    %v1020 = vpop.f32.mrf.mxu0
    %v1021 = vadd.f32 %v895, %v1020
    %v1022 = vpop.f32.mrf.mxu0
    %v1023 = vadd.f32 %v900, %v1022
    %1024 = vmatmul.bf16.gmra.mxu0 %v981
    %v1025 = vpop.f32.mrf.mxu0
    %v1026 = vadd.f32 %v905, %v1025
    %v1027 = vpop.f32.mrf.mxu0
    %v1028 = vadd.f32 %v910, %v1027
    %1029 = vmatmul.bf16.gmra.mxu0 %v984
    %v1030 = vpop.f32.mrf.mxu0
    %v1031 = vadd.f32 %v915, %v1030
    %v1032 = vpop.f32.mrf.mxu0
    %v1033 = vadd.f32 %v920, %v1032
    %1034 = vdwg.mxu0
    %v1035 = vxor.u32 %v996, 2147483648
    %v1036 = vxor.u32 %v998, 2147483648
    %v1037 = vxor.u32 %v1001, 2147483648
    %v1038 = vxor.u32 %v1003, 2147483648
    %v1039 = vxor.u32 %v1006, 2147483648
    %v1040 = vxor.u32 %v1008, 2147483648
    %v1041 = vxor.u32 %v1011, 2147483648
    %v1042 = vxor.u32 %v1013, 2147483648
    %v1043 = vxor.u32 %v1016, 2147483648
    %v1044 = vxor.u32 %v1018, 2147483648
    %v1045 = vxor.u32 %v1021, 2147483648
    %v1046 = vxor.u32 %v1023, 2147483648
    %v1047 = vxor.u32 %v1026, 2147483648
    %v1048 = vxor.u32 %v1028, 2147483648
    %v1049 = vxor.u32 %v1031, 2147483648
    %v1050 = vxor.u32 %v1033, 2147483648
    %v1051 = vmul.f32 %v1035, 1.442695
    %v1052 = vpow.pop %v1051
    %v1053 = vmul.f32 %v1036, 1.442695
    %v1054 = vpow.pop %v1053
    %v1055 = vmul.f32 %v1037, 1.442695
    %v1056 = vpow.pop %v1055
    %v1057 = vmul.f32 %v1038, 1.442695
    %v1058 = vpow.pop %v1057
    %v1059 = vmul.f32 %v1039, 1.442695
    %v1060 = vpow.pop %v1059
    %v1061 = vmul.f32 %v1040, 1.442695
    %v1062 = vpow.pop %v1061
    %v1063 = vmul.f32 %v1041, 1.442695
    %v1064 = vpow.pop %v1063
    %v1065 = vmul.f32 %v1042, 1.442695
    %v1066 = vpow.pop %v1065
    %v1067 = vmul.f32 %v1043, 1.442695
    %v1068 = vpow.pop %v1067
    %v1069 = vmul.f32 %v1044, 1.442695
    %v1070 = vpow.pop %v1069
    %v1071 = vmul.f32 %v1045, 1.442695
    %v1072 = vpow.pop %v1071
    %v1073 = vmul.f32 %v1046, 1.442695
    %v1074 = vpow.pop %v1073
    %v1075 = vmul.f32 %v1047, 1.442695
    %v1076 = vpow.pop %v1075
    %v1077 = vmul.f32 %v1048, 1.442695
    %v1078 = vpow.pop %v1077
    %v1079 = vmul.f32 %v1049, 1.442695
    %v1080 = vpow.pop %v1079
    %v1081 = vmul.f32 %v1050, 1.442695
    %v1082 = vpow.pop %v1081
    %v1083 = vadd.f32 %v1052, 1.0
    %v1084 = vadd.f32 %v1054, 1.0
    %v1085 = vadd.f32 %v1056, 1.0
    %v1086 = vadd.f32 %v1058, 1.0
    %v1087 = vadd.f32 %v1060, 1.0
    %v1088 = vadd.f32 %v1062, 1.0
    %v1089 = vadd.f32 %v1064, 1.0
    %v1090 = vadd.f32 %v1066, 1.0
    %v1091 = vadd.f32 %v1068, 1.0
    %v1092 = vadd.f32 %v1070, 1.0
    %v1093 = vadd.f32 %v1072, 1.0
    %v1094 = vadd.f32 %v1074, 1.0
    %v1095 = vadd.f32 %v1076, 1.0
    %v1096 = vadd.f32 %v1078, 1.0
    %v1097 = vadd.f32 %v1080, 1.0
    %v1098 = vadd.f32 %v1082, 1.0
    %v1099 = vrcp.pop %v1083
    %v1100 = vmul.f32 %v1083, %v1099
    %v1101 = vsub.f32 1.0, %v1100
    %v1102 = vmul.f32 %v1099, %v1101
    %v1103 = vadd.f32 %v1099, %v1102
    %vm1104 = vweird.f32 %v1083
    %vm1105 = vweird.f32 %v1099
    %vm1106 = vmor %vm1104, %vm1105
    %v1107 = vsel %vm1106, %v1099, %v1103
    %v1108 = vand.u32 2147483647, %v1083
    %vm1109 = vcmp.eq.f32.partialorder %v1108, 8.507059e+37
    %v1110 = vand.u32 %v1083, 2147483648
    %v1111 = vor.u32 1.1754944e-38, %v1110
    %v1112 = vsel %vm1109, %v1111, %v1107
    %v1113 = vmul.f32 1.0, %v1112
    %v1114 = vrcp.pop %v1084
    %v1115 = vmul.f32 %v1084, %v1114
    %v1116 = vsub.f32 1.0, %v1115
    %v1117 = vmul.f32 %v1114, %v1116
    %v1118 = vadd.f32 %v1114, %v1117
    %vm1119 = vweird.f32 %v1084
    %vm1120 = vweird.f32 %v1114
    %vm1121 = vmor %vm1119, %vm1120
    %v1122 = vsel %vm1121, %v1114, %v1118
    %v1123 = vand.u32 2147483647, %v1084
    %vm1124 = vcmp.eq.f32.partialorder %v1123, 8.507059e+37
    %v1125 = vand.u32 %v1084, 2147483648
    %v1126 = vor.u32 1.1754944e-38, %v1125
    %v1127 = vsel %vm1124, %v1126, %v1122
    %v1128 = vmul.f32 1.0, %v1127
    %v1129 = vrcp.pop %v1085
    %v1130 = vmul.f32 %v1085, %v1129
    %v1131 = vsub.f32 1.0, %v1130
    %v1132 = vmul.f32 %v1129, %v1131
    %v1133 = vadd.f32 %v1129, %v1132
    %vm1134 = vweird.f32 %v1085
    %vm1135 = vweird.f32 %v1129
    %vm1136 = vmor %vm1134, %vm1135
    %v1137 = vsel %vm1136, %v1129, %v1133
    %v1138 = vand.u32 2147483647, %v1085
    %vm1139 = vcmp.eq.f32.partialorder %v1138, 8.507059e+37
    %v1140 = vand.u32 %v1085, 2147483648
    %v1141 = vor.u32 1.1754944e-38, %v1140
    %v1142 = vsel %vm1139, %v1141, %v1137
    %v1143 = vmul.f32 1.0, %v1142
    %v1144 = vrcp.pop %v1086
    %v1145 = vmul.f32 %v1086, %v1144
    %v1146 = vsub.f32 1.0, %v1145
    %v1147 = vmul.f32 %v1144, %v1146
    %v1148 = vadd.f32 %v1144, %v1147
    %vm1149 = vweird.f32 %v1086
    %vm1150 = vweird.f32 %v1144
    %vm1151 = vmor %vm1149, %vm1150
    %v1152 = vsel %vm1151, %v1144, %v1148
    %v1153 = vand.u32 2147483647, %v1086
    %vm1154 = vcmp.eq.f32.partialorder %v1153, 8.507059e+37
    %v1155 = vand.u32 %v1086, 2147483648
    %v1156 = vor.u32 1.1754944e-38, %v1155
    %v1157 = vsel %vm1154, %v1156, %v1152
    %v1158 = vmul.f32 1.0, %v1157
    %v1159 = vrcp.pop %v1087
    %v1160 = vmul.f32 %v1087, %v1159
    %v1161 = vsub.f32 1.0, %v1160
    %v1162 = vmul.f32 %v1159, %v1161
    %v1163 = vadd.f32 %v1159, %v1162
    %vm1164 = vweird.f32 %v1087
    %vm1165 = vweird.f32 %v1159
    %vm1166 = vmor %vm1164, %vm1165
    %v1167 = vsel %vm1166, %v1159, %v1163
    %v1168 = vand.u32 2147483647, %v1087
    %vm1169 = vcmp.eq.f32.partialorder %v1168, 8.507059e+37
    %v1170 = vand.u32 %v1087, 2147483648
    %v1171 = vor.u32 1.1754944e-38, %v1170
    %v1172 = vsel %vm1169, %v1171, %v1167
    %v1173 = vmul.f32 1.0, %v1172
    %v1174 = vrcp.pop %v1088
    %v1175 = vmul.f32 %v1088, %v1174
    %v1176 = vsub.f32 1.0, %v1175
    %v1177 = vmul.f32 %v1174, %v1176
    %v1178 = vadd.f32 %v1174, %v1177
    %vm1179 = vweird.f32 %v1088
    %vm1180 = vweird.f32 %v1174
    %vm1181 = vmor %vm1179, %vm1180
    %v1182 = vsel %vm1181, %v1174, %v1178
    %v1183 = vand.u32 2147483647, %v1088
    %vm1184 = vcmp.eq.f32.partialorder %v1183, 8.507059e+37
    %v1185 = vand.u32 %v1088, 2147483648
    %v1186 = vor.u32 1.1754944e-38, %v1185
    %v1187 = vsel %vm1184, %v1186, %v1182
    %v1188 = vmul.f32 1.0, %v1187
    %v1189 = vrcp.pop %v1089
    %v1190 = vmul.f32 %v1089, %v1189
    %v1191 = vsub.f32 1.0, %v1190
    %v1192 = vmul.f32 %v1189, %v1191
    %v1193 = vadd.f32 %v1189, %v1192
    %vm1194 = vweird.f32 %v1089
    %vm1195 = vweird.f32 %v1189
    %vm1196 = vmor %vm1194, %vm1195
    %v1197 = vsel %vm1196, %v1189, %v1193
    %v1198 = vand.u32 2147483647, %v1089
    %vm1199 = vcmp.eq.f32.partialorder %v1198, 8.507059e+37
    %v1200 = vand.u32 %v1089, 2147483648
    %v1201 = vor.u32 1.1754944e-38, %v1200
    %v1202 = vsel %vm1199, %v1201, %v1197
    %v1203 = vmul.f32 1.0, %v1202
    %v1204 = vrcp.pop %v1090
    %v1205 = vmul.f32 %v1090, %v1204
    %v1206 = vsub.f32 1.0, %v1205
    %v1207 = vmul.f32 %v1204, %v1206
    %v1208 = vadd.f32 %v1204, %v1207
    %vm1209 = vweird.f32 %v1090
    %vm1210 = vweird.f32 %v1204
    %vm1211 = vmor %vm1209, %vm1210
    %v1212 = vsel %vm1211, %v1204, %v1208
    %v1213 = vand.u32 2147483647, %v1090
    %vm1214 = vcmp.eq.f32.partialorder %v1213, 8.507059e+37
    %v1215 = vand.u32 %v1090, 2147483648
    %v1216 = vor.u32 1.1754944e-38, %v1215
    %v1217 = vsel %vm1214, %v1216, %v1212
    %v1218 = vmul.f32 1.0, %v1217
    %v1219 = vrcp.pop %v1091
    %v1220 = vmul.f32 %v1091, %v1219
    %v1221 = vsub.f32 1.0, %v1220
    %v1222 = vmul.f32 %v1219, %v1221
    %v1223 = vadd.f32 %v1219, %v1222
    %vm1224 = vweird.f32 %v1091
    %vm1225 = vweird.f32 %v1219
    %vm1226 = vmor %vm1224, %vm1225
    %v1227 = vsel %vm1226, %v1219, %v1223
    %v1228 = vand.u32 2147483647, %v1091
    %vm1229 = vcmp.eq.f32.partialorder %v1228, 8.507059e+37
    %v1230 = vand.u32 %v1091, 2147483648
    %v1231 = vor.u32 1.1754944e-38, %v1230
    %v1232 = vsel %vm1229, %v1231, %v1227
    %v1233 = vmul.f32 1.0, %v1232
    %v1234 = vrcp.pop %v1092
    %v1235 = vmul.f32 %v1092, %v1234
    %v1236 = vsub.f32 1.0, %v1235
    %v1237 = vmul.f32 %v1234, %v1236
    %v1238 = vadd.f32 %v1234, %v1237
    %vm1239 = vweird.f32 %v1092
    %vm1240 = vweird.f32 %v1234
    %vm1241 = vmor %vm1239, %vm1240
    %v1242 = vsel %vm1241, %v1234, %v1238
    %v1243 = vand.u32 2147483647, %v1092
    %vm1244 = vcmp.eq.f32.partialorder %v1243, 8.507059e+37
    %v1245 = vand.u32 %v1092, 2147483648
    %v1246 = vor.u32 1.1754944e-38, %v1245
    %v1247 = vsel %vm1244, %v1246, %v1242
    %v1248 = vmul.f32 1.0, %v1247
    %v1249 = vrcp.pop %v1093
    %v1250 = vmul.f32 %v1093, %v1249
    %v1251 = vsub.f32 1.0, %v1250
    %v1252 = vmul.f32 %v1249, %v1251
    %v1253 = vadd.f32 %v1249, %v1252
    %vm1254 = vweird.f32 %v1093
    %vm1255 = vweird.f32 %v1249
    %vm1256 = vmor %vm1254, %vm1255
    %v1257 = vsel %vm1256, %v1249, %v1253
    %v1258 = vand.u32 2147483647, %v1093
    %vm1259 = vcmp.eq.f32.partialorder %v1258, 8.507059e+37
    %v1260 = vand.u32 %v1093, 2147483648
    %v1261 = vor.u32 1.1754944e-38, %v1260
    %v1262 = vsel %vm1259, %v1261, %v1257
    %v1263 = vmul.f32 1.0, %v1262
    %v1264 = vrcp.pop %v1094
    %v1265 = vmul.f32 %v1094, %v1264
    %v1266 = vsub.f32 1.0, %v1265
    %v1267 = vmul.f32 %v1264, %v1266
    %v1268 = vadd.f32 %v1264, %v1267
    %vm1269 = vweird.f32 %v1094
    %vm1270 = vweird.f32 %v1264
    %vm1271 = vmor %vm1269, %vm1270
    %v1272 = vsel %vm1271, %v1264, %v1268
    %v1273 = vand.u32 2147483647, %v1094
    %vm1274 = vcmp.eq.f32.partialorder %v1273, 8.507059e+37
    %v1275 = vand.u32 %v1094, 2147483648
    %v1276 = vor.u32 1.1754944e-38, %v1275
    %v1277 = vsel %vm1274, %v1276, %v1272
    %v1278 = vmul.f32 1.0, %v1277
    %v1279 = vrcp.pop %v1095
    %v1280 = vmul.f32 %v1095, %v1279
    %v1281 = vsub.f32 1.0, %v1280
    %v1282 = vmul.f32 %v1279, %v1281
    %v1283 = vadd.f32 %v1279, %v1282
    %vm1284 = vweird.f32 %v1095
    %vm1285 = vweird.f32 %v1279
    %vm1286 = vmor %vm1284, %vm1285
    %v1287 = vsel %vm1286, %v1279, %v1283
    %v1288 = vand.u32 2147483647, %v1095
    %vm1289 = vcmp.eq.f32.partialorder %v1288, 8.507059e+37
    %v1290 = vand.u32 %v1095, 2147483648
    %v1291 = vor.u32 1.1754944e-38, %v1290
    %v1292 = vsel %vm1289, %v1291, %v1287
    %v1293 = vmul.f32 1.0, %v1292
    %v1294 = vrcp.pop %v1096
    %v1295 = vmul.f32 %v1096, %v1294
    %v1296 = vsub.f32 1.0, %v1295
    %v1297 = vmul.f32 %v1294, %v1296
    %v1298 = vadd.f32 %v1294, %v1297
    %vm1299 = vweird.f32 %v1096
    %vm1300 = vweird.f32 %v1294
    %vm1301 = vmor %vm1299, %vm1300
    %v1302 = vsel %vm1301, %v1294, %v1298
    %v1303 = vand.u32 2147483647, %v1096
    %vm1304 = vcmp.eq.f32.partialorder %v1303, 8.507059e+37
    %v1305 = vand.u32 %v1096, 2147483648
    %v1306 = vor.u32 1.1754944e-38, %v1305
    %v1307 = vsel %vm1304, %v1306, %v1302
    %v1308 = vmul.f32 1.0, %v1307
    %v1309 = vrcp.pop %v1097
    %v1310 = vmul.f32 %v1097, %v1309
    %v1311 = vsub.f32 1.0, %v1310
    %v1312 = vmul.f32 %v1309, %v1311
    %v1313 = vadd.f32 %v1309, %v1312
    %vm1314 = vweird.f32 %v1097
    %vm1315 = vweird.f32 %v1309
    %vm1316 = vmor %vm1314, %vm1315
    %v1317 = vsel %vm1316, %v1309, %v1313
    %v1318 = vand.u32 2147483647, %v1097
    %vm1319 = vcmp.eq.f32.partialorder %v1318, 8.507059e+37
    %v1320 = vand.u32 %v1097, 2147483648
    %v1321 = vor.u32 1.1754944e-38, %v1320
    %v1322 = vsel %vm1319, %v1321, %v1317
    %v1323 = vmul.f32 1.0, %v1322
    %v1324 = vrcp.pop %v1098
    %v1325 = vmul.f32 %v1098, %v1324
    %v1326 = vsub.f32 1.0, %v1325
    %v1327 = vmul.f32 %v1324, %v1326
    %v1328 = vadd.f32 %v1324, %v1327
    %vm1329 = vweird.f32 %v1098
    %vm1330 = vweird.f32 %v1324
    %vm1331 = vmor %vm1329, %vm1330
    %v1332 = vsel %vm1331, %v1324, %v1328
    %v1333 = vand.u32 2147483647, %v1098
    %vm1334 = vcmp.eq.f32.partialorder %v1333, 8.507059e+37
    %v1335 = vand.u32 %v1098, 2147483648
    %v1336 = vor.u32 1.1754944e-38, %v1335
    %v1337 = vsel %vm1334, %v1336, %v1332
    %v1338 = vmul.f32 1.0, %v1337
    %v1339 = vmul.f32 %v343, %v794
    %v1340 = vmul.f32 %v358, %v795
    %v1341 = vmul.f32 %v373, %v796
    %v1342 = vmul.f32 %v388, %v797
    %v1343 = vmul.f32 %v403, %v798
    %v1344 = vmul.f32 %v418, %v799
    %v1345 = vmul.f32 %v433, %v800
    %v1346 = vmul.f32 %v448, %v801
    %v1347 = vmul.f32 %v463, %v802
    %v1348 = vmul.f32 %v478, %v803
    %v1349 = vmul.f32 %v493, %v804
    %v1350 = vmul.f32 %v508, %v805
    %v1351 = vmul.f32 %v523, %v806
    %v1352 = vmul.f32 %v538, %v807
    %v1353 = vmul.f32 %v553, %v808
    %v1354 = vmul.f32 %v568, %v809
    %v1355 = vtanh.pop %v1339
    %v1356 = vtanh.pop %v1340
    %v1357 = vtanh.pop %v1341
    %v1358 = vtanh.pop %v1342
    %v1359 = vtanh.pop %v1343
    %v1360 = vtanh.pop %v1344
    %v1361 = vtanh.pop %v1345
    %v1362 = vtanh.pop %v1346
    %v1363 = vtanh.pop %v1347
    %v1364 = vtanh.pop %v1348
    %v1365 = vtanh.pop %v1349
    %v1366 = vtanh.pop %v1350
    %v1367 = vtanh.pop %v1351
    %v1368 = vtanh.pop %v1352
    %v1369 = vtanh.pop %v1353
    %v1370 = vtanh.pop %v1354
    %v1371 = vmul.f32 %v1113, %v1355
    %v1372 = vmul.f32 %v1128, %v1356
    %v1373 = vmul.f32 %v1143, %v1357
    %v1374 = vmul.f32 %v1158, %v1358
    %v1375 = vmul.f32 %v1173, %v1359
    %v1376 = vmul.f32 %v1188, %v1360
    %v1377 = vmul.f32 %v1203, %v1361
    %v1378 = vmul.f32 %v1218, %v1362
    %v1379 = vmul.f32 %v1233, %v1363
    %v1380 = vmul.f32 %v1248, %v1364
    %v1381 = vmul.f32 %v1263, %v1365
    %v1382 = vmul.f32 %v1278, %v1366
    %v1383 = vmul.f32 %v1293, %v1367
    %v1384 = vmul.f32 %v1308, %v1368
    %v1385 = vmul.f32 %v1323, %v1369
    %v1386 = vmul.f32 %v1338, %v1370
    %v1387 = vld [vmem:[%s3] sm:$0xf]
    %v1388 = vpack.c.bf16 %v1372, %v1371
    %v1389 = vpack.c.bf16 %v1374, %v1373
    %v1390 = vpack.c.bf16 %v1376, %v1375
    %v1391 = vpack.c.bf16 %v1378, %v1377
    %v1392 = vpack.c.bf16 %v1380, %v1379
    %v1393 = vpack.c.bf16 %v1382, %v1381
    %v1394 = vpack.c.bf16 %v1384, %v1383
    %v1395 = vpack.c.bf16 %v1386, %v1385
    %1396 = vmatpush.bf16.msra.mxu0 %v1395
    %1397 = vmatpush.bf16.msra.mxu0 %v1394
    %1398 = vmatpush.bf16.msra.mxu0 %v1393
    %1399 = vmatpush.bf16.msra.mxu0 %v1392
    %1400 = vmatpush.bf16.msra.mxu0 %v1391
    %1401 = vmatpush.bf16.msra.mxu0 %v1390
    %1402 = vmatpush.bf16.msra.mxu0 %v1389
    %1403 = vmatpush.bf16.msra.mxu0 %v1388
    %1404 = vmatmul.bf16.gmra.mxu0 %v1387
    %v1405 = vpop.f32.mrf.mxu0
    %v1406 = vadd.f32 0.0, %v1405
    %v1407 = vpop.f32.mrf.mxu0
    %1408 = vdwg.mxu0
    %s1409 = sld [smem:[#allocation2]]
    %v1410 = vstv %s1409
    %v1411 = vadd.f32 %v1406, %v1410
    %1412 = vst [vmem:[#allocation3] sm:$0x1] %v1411
    // Predicated region
    $region22: #{tpu_custom_call.1} parent=1 // pred_check
      _
    $region23: #{tpu_custom_call.1} parent=1 // pred_check_branch
      %1414 = sbr.rel (0) target = $region25
    $region24: #{tpu_custom_call.1} parent=1 // pred_region
      %1416 = vsyncadd [#allocation4], 0
      %s1418 = sshll.u32 [#allocation3], 4
      %s1419 = int_to_ptr.vmem [resolvable:$true] %s1418
      %s1420 = sshll.u32 %s5, 4
      %s1421 = int_to_ptr.hbm [resolvable:$true] %s1420
      %1423 = dma.vmem_to_hbm [thread:$0]  %s1419, 16, %s1421, [#allocation4]
    $region25: #{tpu_custom_call.1} parent=1 // pred_fallthru
      _
    // Predicated region
    $region26: #{tpu_custom_call.1} parent=1 // pred_check
      _
    $region27: #{tpu_custom_call.1} parent=1 // pred_check_branch
      %1425 = sbr.rel (0) target = $region29
    $region28: #{tpu_custom_call.1} parent=1 // pred_region
      %1427 = dma.done [#allocation4], 16
    $region29: #{tpu_custom_call.1} parent=1 // pred_fallthru
      _
    %1428 = vsyncpa [#allocation4], 1

</llo_original>
